<compile_context>
chip_gen: v5e
topology: v5e:2x2
jax: 0.10.0
libtpu: 0.0.40
codegen_flags: <defaults>
</compile_context>

<pallas_src>
import functools

import numpy as np
import jax
import jax.numpy as jnp
from jax.experimental import pallas as pl
from jax.experimental.pallas import tpu as pltpu


# ----------------------- exact linear operators (numpy, cached) -------------

def adaptive_pool_matrix(out_size, in_size):
    """A (out,in) s.t. pooled = A @ x along one axis; matches F.adaptive_avg_pool2d."""
    A = np.zeros((out_size, in_size), np.float32)
    for a in range(out_size):
        start = (a * in_size) // out_size
        end = -(-((a + 1) * in_size) // out_size)  # ceil
        A[a, start:end] = 1.0 / (end - start)
    return A


def bilinear_matrix(out_size, in_size):
    """U (out,in) s.t. up = U @ x; matches F.interpolate(mode='bilinear',
    align_corners=False) (half-pixel centers, negative src clamped to 0)."""
    U = np.zeros((out_size, in_size), np.float32)
    scale = in_size / out_size
    for i in range(out_size):
        src = max((i + 0.5) * scale - 0.5, 0.0)
        i0 = min(int(np.floor(src)), in_size - 1)
        i1 = min(i0 + 1, in_size - 1)
        l1 = src - i0
        U[i, i0] += 1.0 - l1
        U[i, i1] += l1
    return U


def conv3x3_shift_matrices(P):
    """S[k] (PP,PP): S[k][q,p] = 1 iff tap k (k = di*3+dj) of output pixel p reads
    input pixel q (zero padding => column of zeros when out of bounds)."""
    S = np.zeros((9, P * P, P * P), np.float32)
    for di in range(3):
        for dj in range(3):
            k = di * 3 + dj
            for i in range(P):
                for j in range(P):
                    si, sj = i + di - 1, j + dj - 1
                    if 0 <= si < P and 0 <= sj < P:
                        S[k, si * P + sj, i * P + j] = 1.0
    return S


@functools.lru_cache(maxsize=None)
def _spatial_operators(H, W, P):
    """Built once per (H, W, P); pool/upsample weights are exact in bf16 here."""
    poolT = np.kron(adaptive_pool_matrix(P, H), adaptive_pool_matrix(P, W)).T    # (HW, PP)
    upT = np.kron(bilinear_matrix(H, P), bilinear_matrix(W, P)).T                # (PP, HW)
    shifts = conv3x3_shift_matrices(P)                                           # (9, PP, PP)
    return poolT, upT, shifts


# ---------------------------------- Pallas kernel ---------------------------

def conv_zoom_att_kernel(x_ref, wlead_ref, blead_ref, poolT_ref, wmix_ref,
                         b3_ref, s_ref, w1_ref, b1_ref, upT_ref, o_ref):
    C2 = wlead_ref.shape[0]
    x = x_ref[0]                                                     # (C1, HW) bf16

    # 1x1 conv (bias-free) + eval-mode BN (folded) + SiLU (f32 elementwise).
    y = jnp.dot(wlead_ref[...], x, preferred_element_type=jnp.float32) + blead_ref[...]
    y = y * jax.nn.sigmoid(y)                                        # SiLU, (C2, HW) f32

    # Adaptive average pool as one matmul over the flattened spatial axis.
    pooled = jnp.dot(y.astype(jnp.bfloat16), poolT_ref[...],
                     preferred_element_type=jnp.float32)             # (C2, PP) f32

    # 3x3 conv (BN folded): one stacked channel-mix matmul for all 9 taps,
    # then 9 spatial shift matmuls whose partial products are tree-summed.
    mixed = jnp.dot(wmix_ref[...], pooled.astype(jnp.bfloat16),
                    preferred_element_type=jnp.float32)              # (9*C2, PP) f32
    parts = [jnp.dot(mixed[k * C2:(k + 1) * C2, :], s_ref[k],
                     preferred_element_type=jnp.float32) for k in range(9)]
    acc = (((parts[0] + parts[1]) + (parts[2] + parts[3]))
           + ((parts[4] + parts[5]) + (parts[6] + parts[7]))) + parts[8]
    h = jnp.maximum(acc + b3_ref[...], 0.0)                          # ReLU, (C2, PP) f32

    # 1x1 refiner conv + sigmoid.
    z = jnp.dot(w1_ref[...], h.astype(jnp.bfloat16),
                preferred_element_type=jnp.float32) + b1_ref[...]
    a = jax.nn.sigmoid(z)                                            # (C2, PP) f32

    # Bilinear upsample (align_corners=False) as one matmul, then gate y.
    attn = jnp.dot(a.astype(jnp.bfloat16), upT_ref[...],
                   preferred_element_type=jnp.float32)               # (C2, HW) f32
    o_ref[0] = (y * attn).astype(o_ref.dtype)                        # lane-dense store


# ------------------------------ wrapper (fold once, call many) --------------

def precompute_conv_zoom_att(params, H, W, patch_size=4, eps=1e-5):
    """Fold eval-mode BatchNorm into the conv weights and build the exact
    pool/upsample/shift operators.  Call ONCE (module init), reuse per forward."""
    (wc, g1, be1, m1, v1, w3, b3, g2, be2, m2, v2, w1, b1) = params
    C2, C1 = wc.shape[0], wc.shape[1]

    # conv1x1 (bias-free) + BN1 (eval mode, running stats)
    s1 = g1 / jnp.sqrt(v1 + eps)
    wlead = (s1[:, None] * wc.reshape(C2, C1)).astype(jnp.bfloat16)          # (C2, C1)
    blead = (be1 - m1 * s1).reshape(C2, 1).astype(jnp.float32)

    # refiner conv3x3 + BN2 (eval mode); stack the 9 taps vertically (k = di*3+dj)
    s2 = g2 / jnp.sqrt(v2 + eps)
    w3f = w3 * s2[:, None, None, None]
    wmix = jnp.transpose(w3f, (2, 3, 0, 1)).reshape(9 * C2, C2).astype(jnp.bfloat16)
    b3col = (b3 * s2 + be2 - m2 * s2).reshape(C2, 1).astype(jnp.float32)

    # refiner 1x1 conv
    w1b = w1.astype(jnp.bfloat16)                                            # (C2, C2)
    b1col = b1.reshape(C2, 1).astype(jnp.float32)

    # exact spatial operators (cached numpy); pool/bilinear weights exact in bf16
    poolT_np, upT_np, shifts_np = _spatial_operators(H, W, patch_size)
    poolT = jnp.asarray(poolT_np, jnp.bfloat16)                              # (HW, PP)
    upT = jnp.asarray(upT_np, jnp.bfloat16)                                  # (PP, HW)
    shifts = jnp.asarray(shifts_np, jnp.float32)                             # (9, PP, PP)

    return (wlead, blead, poolT, wmix, b3col, shifts, w1b, b1col, upT)


def conv_zoom_att(x, prepared, patch_size=4):
    (wlead, blead, poolT, wmix, b3col, shifts, w1b, b1col, upT) = prepared
    B, C1, H, W = x.shape
    C2 = wlead.shape[0]
    HW, PP = H * W, patch_size * patch_size

    # free metadata reshape: (B, C, H, W) -> (B, C, HW); spatial axis on lanes.
    # bf16 x halves the per-step input DMA bytes; accumulation stays f32.
    x3 = x.reshape(B, C1, HW).astype(jnp.bfloat16)

    batch_map = lambda b: (b, 0, 0)
    const2 = lambda b: (0, 0)
    const3 = lambda b: (0, 0, 0)

    out = pl.pallas_call(
        conv_zoom_att_kernel,
        out_shape=jax.ShapeDtypeStruct((B, C2, HW), x.dtype),
        grid=(B,),
        in_specs=[
            pl.BlockSpec((1, C1, HW), batch_map),     # x      : one image per grid step
            pl.BlockSpec((C2, C1), const2),           # wlead  : resident across steps
            pl.BlockSpec((C2, 1), const2),            # blead
            pl.BlockSpec((HW, PP), const2),           # poolT
            pl.BlockSpec((9 * C2, C2), const2),       # wmix (9 stacked taps)
            pl.BlockSpec((C2, 1), const2),            # b3
            pl.BlockSpec((9, PP, PP), const3),        # shift operators
            pl.BlockSpec((C2, C2), const2),           # w1
            pl.BlockSpec((C2, 1), const2),            # b1
            pl.BlockSpec((PP, HW), const2),           # upT
        ],
        out_specs=pl.BlockSpec((1, C2, HW), batch_map),
        compiler_params=pltpu.CompilerParams(
            dimension_semantics=("parallel",),        # shard batch across TCs (v7x)
            vmem_limit_bytes=32 * 1024 * 1024,        # sized for v7x's 64 MiB part
        ),
    )(x3, wlead, blead, poolT, wmix, b3col, shifts, w1b, b1col, upT)
    return out.reshape(B, C2, H, W)


# ------------------------------ pure-JAX reference --------------------------

def conv_zoom_att_ref(x, params, patch_size=4):
    (wc, g1, be1, m1, v1, w3, b3, g2, be2, m2, v2, w1, b1) = params
    eps = 1e-5
    B, C1, H, W = x.shape
    C2 = wc.shape[0]
    P = patch_size
    # Conv1x1 (no bias) + BN (eval) + SiLU
    y = jnp.einsum('oc,bchw->bohw', wc.reshape(C2, C1), x)
    y = ((y - m1[None, :, None, None]) / jnp.sqrt(v1[None, :, None, None] + eps)
         * g1[None, :, None, None] + be1[None, :, None, None])
    y = y * jax.nn.sigmoid(y)
    # ZoomAttention: H, W divisible by P => adaptive pool == uniform avg pool
    pooled = y.reshape(B, C2, P, H // P, P, W // P).mean(axis=(3, 5))
    conv = jax.lax.conv_general_dilated(
        pooled, w3, (1, 1), [(1, 1), (1, 1)],
        dimension_numbers=('NCHW', 'OIHW', 'NCHW')) + b3[None, :, None, None]
    bn = ((conv - m2[None, :, None, None]) / jnp.sqrt(v2[None, :, None, None] + eps)
          * g2[None, :, None, None] + be2[None, :, None, None])
    h = jnp.maximum(bn, 0.0)
    z = jnp.einsum('oc,bcpq->bopq', w1, h) + b1[None, :, None, None]
    a = jax.nn.sigmoid(z)
    Uh = jnp.asarray(bilinear_matrix(H, P))
    Uw = jnp.asarray(bilinear_matrix(W, P))
    attn = jnp.einsum('hp,bcpq,wq->bchw', Uh, a, Uw)
    return y * attn


if __name__ == "__main__":
    B, C, H, W, P = 2, 8, 16, 16, 4
    key = jax.random.PRNGKey(0)
    kx, kwc, kw3, kb3, kw1, kb1 = jax.random.split(key, 6)
    x = jax.random.normal(kx, (B, C, H, W), jnp.float32)
    wc = jax.random.normal(kwc, (C, C, 1, 1), jnp.float32) * 0.3
    w3 = jax.random.normal(kw3, (C, C, 3, 3), jnp.float32) * 0.2
    b3 = jax.random.normal(kb3, (C,), jnp.float32) * 0.1
    w1 = jax.random.normal(kw1, (C, C), jnp.float32) * 0.2
    b1 = jax.random.normal(kb1, (C,), jnp.float32) * 0.1
    g1 = jnp.linspace(0.9, 1.1, C, dtype=jnp.float32)
    be1 = jnp.linspace(-0.05, 0.05, C, dtype=jnp.float32)
    m1 = jnp.linspace(-0.02, 0.02, C, dtype=jnp.float32)
    v1 = jnp.linspace(0.8, 1.2, C, dtype=jnp.float32)
    g2 = jnp.linspace(0.8, 1.2, C, dtype=jnp.float32)
    be2 = jnp.linspace(-0.1, 0.1, C, dtype=jnp.float32)
    m2 = jnp.linspace(-0.05, 0.05, C, dtype=jnp.float32)
    v2 = jnp.linspace(0.9, 1.1, C, dtype=jnp.float32)
    params = (wc, g1, be1, m1, v1, w3, b3, g2, be2, m2, v2, w1, b1)

    prepared = precompute_conv_zoom_att(params, H, W, patch_size=P)   # once (module init)
    out = conv_zoom_att(x, prepared, patch_size=P)
    jax.block_until_ready(out)

    ref = conv_zoom_att_ref(x, params, patch_size=P)
    # bf16 MXU operands with f32 accumulation vs. an all-f32 reference.
    np.testing.assert_allclose(np.asarray(out), np.asarray(ref), rtol=2e-2, atol=2e-2)
    print("KERNEL_OK")
</pallas_src>

<mosaic_0001>
module attributes {stable_mosaic.version = 11 : i64} {
  func.func @conv_zoom_att_kernel(%arg0: i32, %arg1: memref<1x8x256xbf16, #tpu.memory_space<vmem>>, %arg2: memref<8x8xbf16, #tpu.memory_space<vmem>>, %arg3: memref<8x1xf32, #tpu.memory_space<vmem>>, %arg4: memref<256x16xbf16, #tpu.memory_space<vmem>>, %arg5: memref<72x8xbf16, #tpu.memory_space<vmem>>, %arg6: memref<8x1xf32, #tpu.memory_space<vmem>>, %arg7: memref<9x16x16xf32, #tpu.memory_space<vmem>>, %arg8: memref<8x8xbf16, #tpu.memory_space<vmem>>, %arg9: memref<8x1xf32, #tpu.memory_space<vmem>>, %arg10: memref<16x256xbf16, #tpu.memory_space<vmem>>, %arg11: memref<1x8x256xf32, #tpu.memory_space<vmem>>) attributes {dimension_semantics = [#tpu.dimension_semantics<parallel>], iteration_bounds = array<i64: 2>, scalar_prefetch = 0 : i64, scratch_operands = 0 : i64, tpu.core_type = #tpu.core_type<tc>, window_params = [{transform_indices = @transform_0, window_bounds = array<i64: 1, 8, 256>}, {pipeline_mode = #tpu.pipeline_mode<synchronous>, transform_indices = @transform_1, window_bounds = array<i64: 8, 8>}, {pipeline_mode = #tpu.pipeline_mode<synchronous>, transform_indices = @transform_2, window_bounds = array<i64: 8, 1>}, {pipeline_mode = #tpu.pipeline_mode<synchronous>, transform_indices = @transform_3, window_bounds = array<i64: 256, 16>}, {pipeline_mode = #tpu.pipeline_mode<synchronous>, transform_indices = @transform_4, window_bounds = array<i64: 72, 8>}, {pipeline_mode = #tpu.pipeline_mode<synchronous>, transform_indices = @transform_5, window_bounds = array<i64: 8, 1>}, {pipeline_mode = #tpu.pipeline_mode<synchronous>, transform_indices = @transform_6, window_bounds = array<i64: 9, 16, 16>}, {pipeline_mode = #tpu.pipeline_mode<synchronous>, transform_indices = @transform_7, window_bounds = array<i64: 8, 8>}, {pipeline_mode = #tpu.pipeline_mode<synchronous>, transform_indices = @transform_8, window_bounds = array<i64: 8, 1>}, {pipeline_mode = #tpu.pipeline_mode<synchronous>, transform_indices = @transform_9, window_bounds = array<i64: 16, 256>}, {transform_indices = @transform_10, window_bounds = array<i64: 1, 8, 256>}]} {
    %c0 = arith.constant 0 : index
    %c0_0 = arith.constant 0 : index
    %c0_1 = arith.constant 0 : index
    %0 = vector.load %arg1[%c0, %c0_0, %c0_1] : memref<1x8x256xbf16, #tpu.memory_space<vmem>>, vector<1x8x256xbf16>
    %1 = vector.shape_cast %0 : vector<1x8x256xbf16> to vector<8x256xbf16>
    %c0_2 = arith.constant 0 : index
    %c0_3 = arith.constant 0 : index
    %2 = vector.load %arg2[%c0_2, %c0_3] : memref<8x8xbf16, #tpu.memory_space<vmem>>, vector<8x8xbf16>
    %cst = arith.constant dense<0.000000e+00> : vector<8x256xf32>
    %3 = tpu.matmul %2, %1, %cst {dimension_numbers = #tpu.dot_dimension_numbers<[1], [0], [0], [1], [0, 0, 1, 1], [], []>} : vector<8x8xbf16>, vector<8x256xbf16>, vector<8x256xf32> -> vector<8x256xf32>
    %c0_4 = arith.constant 0 : index
    %c0_5 = arith.constant 0 : index
    %4 = vector.load %arg3[%c0_4, %c0_5] : memref<8x1xf32, #tpu.memory_space<vmem>>, vector<8x1xf32>
    %5 = vector.broadcast %4 : vector<8x1xf32> to vector<8x256xf32>
    %6 = arith.addf %3, %5 : vector<8x256xf32>
    %7 = arith.negf %6 : vector<8x256xf32>
    %8 = math.exp %7 : vector<8x256xf32>
    %cst_6 = arith.constant 1.000000e+00 : f32
    %9 = vector.broadcast %cst_6 : f32 to vector<8x256xf32>
    %10 = arith.addf %9, %8 : vector<8x256xf32>
    %11 = arith.divf %9, %10 : vector<8x256xf32>
    %12 = arith.mulf %6, %11 : vector<8x256xf32>
    %13 = arith.truncf %12 : vector<8x256xf32> to vector<8x256xbf16>
    %c0_7 = arith.constant 0 : index
    %c0_8 = arith.constant 0 : index
    %14 = vector.load %arg4[%c0_7, %c0_8] : memref<256x16xbf16, #tpu.memory_space<vmem>>, vector<256x16xbf16>
    %cst_9 = arith.constant dense<0.000000e+00> : vector<8x16xf32>
    %15 = tpu.matmul %13, %14, %cst_9 {dimension_numbers = #tpu.dot_dimension_numbers<[1], [0], [0], [1], [0, 0, 1, 1], [], []>} : vector<8x256xbf16>, vector<256x16xbf16>, vector<8x16xf32> -> vector<8x16xf32>
    %c0_10 = arith.constant 0 : index
    %c0_11 = arith.constant 0 : index
    %16 = vector.load %arg5[%c0_10, %c0_11] : memref<72x8xbf16, #tpu.memory_space<vmem>>, vector<72x8xbf16>
    %17 = arith.truncf %15 : vector<8x16xf32> to vector<8x16xbf16>
    %cst_12 = arith.constant dense<0.000000e+00> : vector<72x16xf32>
    %18 = tpu.matmul %16, %17, %cst_12 {dimension_numbers = #tpu.dot_dimension_numbers<[1], [0], [0], [1], [0, 0, 1, 1], [], []>} : vector<72x8xbf16>, vector<8x16xbf16>, vector<72x16xf32> -> vector<72x16xf32>
    %19 = vector.extract_strided_slice %18 {offsets = [0, 0], sizes = [8, 16], strides = [1, 1]} : vector<72x16xf32> to vector<8x16xf32>
    %c0_13 = arith.constant 0 : index
    %c0_14 = arith.constant 0 : index
    %c0_15 = arith.constant 0 : index
    %20 = vector.load %arg7[%c0_13, %c0_14, %c0_15] : memref<9x16x16xf32, #tpu.memory_space<vmem>>, vector<1x16x16xf32>
    %21 = vector.shape_cast %20 : vector<1x16x16xf32> to vector<16x16xf32>
    %cst_16 = arith.constant dense<0.000000e+00> : vector<8x16xf32>
    %22 = tpu.matmul %19, %21, %cst_16 {dimension_numbers = #tpu.dot_dimension_numbers<[1], [0], [0], [1], [0, 0, 1, 1], [], []>} : vector<8x16xf32>, vector<16x16xf32>, vector<8x16xf32> -> vector<8x16xf32>
    %23 = vector.extract_strided_slice %18 {offsets = [8, 0], sizes = [8, 16], strides = [1, 1]} : vector<72x16xf32> to vector<8x16xf32>
    %c1 = arith.constant 1 : index
    %c0_17 = arith.constant 0 : index
    %c0_18 = arith.constant 0 : index
    %24 = vector.load %arg7[%c1, %c0_17, %c0_18] : memref<9x16x16xf32, #tpu.memory_space<vmem>>, vector<1x16x16xf32>
    %25 = vector.shape_cast %24 : vector<1x16x16xf32> to vector<16x16xf32>
    %cst_19 = arith.constant dense<0.000000e+00> : vector<8x16xf32>
    %26 = tpu.matmul %23, %25, %cst_19 {dimension_numbers = #tpu.dot_dimension_numbers<[1], [0], [0], [1], [0, 0, 1, 1], [], []>} : vector<8x16xf32>, vector<16x16xf32>, vector<8x16xf32> -> vector<8x16xf32>
    %27 = vector.extract_strided_slice %18 {offsets = [16, 0], sizes = [8, 16], strides = [1, 1]} : vector<72x16xf32> to vector<8x16xf32>
    %c2 = arith.constant 2 : index
    %c0_20 = arith.constant 0 : index
    %c0_21 = arith.constant 0 : index
    %28 = vector.load %arg7[%c2, %c0_20, %c0_21] : memref<9x16x16xf32, #tpu.memory_space<vmem>>, vector<1x16x16xf32>
    %29 = vector.shape_cast %28 : vector<1x16x16xf32> to vector<16x16xf32>
    %cst_22 = arith.constant dense<0.000000e+00> : vector<8x16xf32>
    %30 = tpu.matmul %27, %29, %cst_22 {dimension_numbers = #tpu.dot_dimension_numbers<[1], [0], [0], [1], [0, 0, 1, 1], [], []>} : vector<8x16xf32>, vector<16x16xf32>, vector<8x16xf32> -> vector<8x16xf32>
    %31 = vector.extract_strided_slice %18 {offsets = [24, 0], sizes = [8, 16], strides = [1, 1]} : vector<72x16xf32> to vector<8x16xf32>
    %c3 = arith.constant 3 : index
    %c0_23 = arith.constant 0 : index
    %c0_24 = arith.constant 0 : index
    %32 = vector.load %arg7[%c3, %c0_23, %c0_24] : memref<9x16x16xf32, #tpu.memory_space<vmem>>, vector<1x16x16xf32>
    %33 = vector.shape_cast %32 : vector<1x16x16xf32> to vector<16x16xf32>
    %cst_25 = arith.constant dense<0.000000e+00> : vector<8x16xf32>
    %34 = tpu.matmul %31, %33, %cst_25 {dimension_numbers = #tpu.dot_dimension_numbers<[1], [0], [0], [1], [0, 0, 1, 1], [], []>} : vector<8x16xf32>, vector<16x16xf32>, vector<8x16xf32> -> vector<8x16xf32>
    %35 = vector.extract_strided_slice %18 {offsets = [32, 0], sizes = [8, 16], strides = [1, 1]} : vector<72x16xf32> to vector<8x16xf32>
    %c4 = arith.constant 4 : index
    %c0_26 = arith.constant 0 : index
    %c0_27 = arith.constant 0 : index
    %36 = vector.load %arg7[%c4, %c0_26, %c0_27] : memref<9x16x16xf32, #tpu.memory_space<vmem>>, vector<1x16x16xf32>
    %37 = vector.shape_cast %36 : vector<1x16x16xf32> to vector<16x16xf32>
    %cst_28 = arith.constant dense<0.000000e+00> : vector<8x16xf32>
    %38 = tpu.matmul %35, %37, %cst_28 {dimension_numbers = #tpu.dot_dimension_numbers<[1], [0], [0], [1], [0, 0, 1, 1], [], []>} : vector<8x16xf32>, vector<16x16xf32>, vector<8x16xf32> -> vector<8x16xf32>
    %39 = vector.extract_strided_slice %18 {offsets = [40, 0], sizes = [8, 16], strides = [1, 1]} : vector<72x16xf32> to vector<8x16xf32>
    %c5 = arith.constant 5 : index
    %c0_29 = arith.constant 0 : index
    %c0_30 = arith.constant 0 : index
    %40 = vector.load %arg7[%c5, %c0_29, %c0_30] : memref<9x16x16xf32, #tpu.memory_space<vmem>>, vector<1x16x16xf32>
    %41 = vector.shape_cast %40 : vector<1x16x16xf32> to vector<16x16xf32>
    %cst_31 = arith.constant dense<0.000000e+00> : vector<8x16xf32>
    %42 = tpu.matmul %39, %41, %cst_31 {dimension_numbers = #tpu.dot_dimension_numbers<[1], [0], [0], [1], [0, 0, 1, 1], [], []>} : vector<8x16xf32>, vector<16x16xf32>, vector<8x16xf32> -> vector<8x16xf32>
    %43 = vector.extract_strided_slice %18 {offsets = [48, 0], sizes = [8, 16], strides = [1, 1]} : vector<72x16xf32> to vector<8x16xf32>
    %c6 = arith.constant 6 : index
    %c0_32 = arith.constant 0 : index
    %c0_33 = arith.constant 0 : index
    %44 = vector.load %arg7[%c6, %c0_32, %c0_33] : memref<9x16x16xf32, #tpu.memory_space<vmem>>, vector<1x16x16xf32>
    %45 = vector.shape_cast %44 : vector<1x16x16xf32> to vector<16x16xf32>
    %cst_34 = arith.constant dense<0.000000e+00> : vector<8x16xf32>
    %46 = tpu.matmul %43, %45, %cst_34 {dimension_numbers = #tpu.dot_dimension_numbers<[1], [0], [0], [1], [0, 0, 1, 1], [], []>} : vector<8x16xf32>, vector<16x16xf32>, vector<8x16xf32> -> vector<8x16xf32>
    %47 = vector.extract_strided_slice %18 {offsets = [56, 0], sizes = [8, 16], strides = [1, 1]} : vector<72x16xf32> to vector<8x16xf32>
    %c7 = arith.constant 7 : index
    %c0_35 = arith.constant 0 : index
    %c0_36 = arith.constant 0 : index
    %48 = vector.load %arg7[%c7, %c0_35, %c0_36] : memref<9x16x16xf32, #tpu.memory_space<vmem>>, vector<1x16x16xf32>
    %49 = vector.shape_cast %48 : vector<1x16x16xf32> to vector<16x16xf32>
    %cst_37 = arith.constant dense<0.000000e+00> : vector<8x16xf32>
    %50 = tpu.matmul %47, %49, %cst_37 {dimension_numbers = #tpu.dot_dimension_numbers<[1], [0], [0], [1], [0, 0, 1, 1], [], []>} : vector<8x16xf32>, vector<16x16xf32>, vector<8x16xf32> -> vector<8x16xf32>
    %51 = vector.extract_strided_slice %18 {offsets = [64, 0], sizes = [8, 16], strides = [1, 1]} : vector<72x16xf32> to vector<8x16xf32>
    %c8 = arith.constant 8 : index
    %c0_38 = arith.constant 0 : index
    %c0_39 = arith.constant 0 : index
    %52 = vector.load %arg7[%c8, %c0_38, %c0_39] : memref<9x16x16xf32, #tpu.memory_space<vmem>>, vector<1x16x16xf32>
    %53 = vector.shape_cast %52 : vector<1x16x16xf32> to vector<16x16xf32>
    %cst_40 = arith.constant dense<0.000000e+00> : vector<8x16xf32>
    %54 = tpu.matmul %51, %53, %cst_40 {dimension_numbers = #tpu.dot_dimension_numbers<[1], [0], [0], [1], [0, 0, 1, 1], [], []>} : vector<8x16xf32>, vector<16x16xf32>, vector<8x16xf32> -> vector<8x16xf32>
    %55 = arith.addf %22, %26 : vector<8x16xf32>
    %56 = arith.addf %30, %34 : vector<8x16xf32>
    %57 = arith.addf %55, %56 : vector<8x16xf32>
    %58 = arith.addf %38, %42 : vector<8x16xf32>
    %59 = arith.addf %46, %50 : vector<8x16xf32>
    %60 = arith.addf %58, %59 : vector<8x16xf32>
    %61 = arith.addf %57, %60 : vector<8x16xf32>
    %62 = arith.addf %61, %54 : vector<8x16xf32>
    %c0_41 = arith.constant 0 : index
    %c0_42 = arith.constant 0 : index
    %63 = vector.load %arg6[%c0_41, %c0_42] : memref<8x1xf32, #tpu.memory_space<vmem>>, vector<8x1xf32>
    %64 = vector.broadcast %63 : vector<8x1xf32> to vector<8x16xf32>
    %65 = arith.addf %62, %64 : vector<8x16xf32>
    %cst_43 = arith.constant 0.000000e+00 : f32
    %66 = vector.broadcast %cst_43 : f32 to vector<8x16xf32>
    %67 = arith.maximumf %65, %66 : vector<8x16xf32>
    %c0_44 = arith.constant 0 : index
    %c0_45 = arith.constant 0 : index
    %68 = vector.load %arg8[%c0_44, %c0_45] : memref<8x8xbf16, #tpu.memory_space<vmem>>, vector<8x8xbf16>
    %69 = arith.truncf %67 : vector<8x16xf32> to vector<8x16xbf16>
    %cst_46 = arith.constant dense<0.000000e+00> : vector<8x16xf32>
    %70 = tpu.matmul %68, %69, %cst_46 {dimension_numbers = #tpu.dot_dimension_numbers<[1], [0], [0], [1], [0, 0, 1, 1], [], []>} : vector<8x8xbf16>, vector<8x16xbf16>, vector<8x16xf32> -> vector<8x16xf32>
    %c0_47 = arith.constant 0 : index
    %c0_48 = arith.constant 0 : index
    %71 = vector.load %arg9[%c0_47, %c0_48] : memref<8x1xf32, #tpu.memory_space<vmem>>, vector<8x1xf32>
    %72 = vector.broadcast %71 : vector<8x1xf32> to vector<8x16xf32>
    %73 = arith.addf %70, %72 : vector<8x16xf32>
    %74 = arith.negf %73 : vector<8x16xf32>
    %75 = math.exp %74 : vector<8x16xf32>
    %cst_49 = arith.constant 1.000000e+00 : f32
    %76 = vector.broadcast %cst_49 : f32 to vector<8x16xf32>
    %77 = arith.addf %76, %75 : vector<8x16xf32>
    %78 = arith.divf %76, %77 : vector<8x16xf32>
    %79 = arith.truncf %78 : vector<8x16xf32> to vector<8x16xbf16>
    %c0_50 = arith.constant 0 : index
    %c0_51 = arith.constant 0 : index
    %80 = vector.load %arg10[%c0_50, %c0_51] : memref<16x256xbf16, #tpu.memory_space<vmem>>, vector<16x256xbf16>
    %cst_52 = arith.constant dense<0.000000e+00> : vector<8x256xf32>
    %81 = tpu.matmul %79, %80, %cst_52 {dimension_numbers = #tpu.dot_dimension_numbers<[1], [0], [0], [1], [0, 0, 1, 1], [], []>} : vector<8x16xbf16>, vector<16x256xbf16>, vector<8x256xf32> -> vector<8x256xf32>
    %82 = arith.mulf %12, %81 : vector<8x256xf32>
    %c0_53 = arith.constant 0 : index
    %c0_54 = arith.constant 0 : index
    %c0_55 = arith.constant 0 : index
    %83 = vector.load %arg11[%c0_53, %c0_54, %c0_55] : memref<1x8x256xf32, #tpu.memory_space<vmem>>, vector<1x8x256xf32>
    %84 = vector.shape_cast %83 : vector<1x8x256xf32> to vector<8x256xf32>
    %85 = vector.shape_cast %82 : vector<8x256xf32> to vector<1x8x256xf32>
    tpu.vector_store %arg11[%c0_53, %c0_54, %c0_55], %85 {strides = array<i32>} : memref<1x8x256xf32, #tpu.memory_space<vmem>>, vector<1x8x256xf32>,
    return
  }
  func.func @transform_0(%arg0: i32) -> (i32, i32, i32) {
    %c0_i32 = arith.constant 0 : i32
    %c0_i32_0 = arith.constant 0 : i32
    %c0_i32_1 = arith.constant 0 : i32
    return %arg0, %c0_i32, %c0_i32_0 : i32, i32, i32
  }
  func.func @transform_1(%arg0: i32) -> (i32, i32) {
    %c0_i32 = arith.constant 0 : i32
    %c0_i32_0 = arith.constant 0 : i32
    %c0_i32_1 = arith.constant 0 : i32
    return %c0_i32, %c0_i32_0 : i32, i32
  }
  func.func @transform_2(%arg0: i32) -> (i32, i32) {
    %c0_i32 = arith.constant 0 : i32
    %c0_i32_0 = arith.constant 0 : i32
    %c0_i32_1 = arith.constant 0 : i32
    return %c0_i32, %c0_i32_0 : i32, i32
  }
  func.func @transform_3(%arg0: i32) -> (i32, i32) {
    %c0_i32 = arith.constant 0 : i32
    %c0_i32_0 = arith.constant 0 : i32
    %c0_i32_1 = arith.constant 0 : i32
    return %c0_i32, %c0_i32_0 : i32, i32
  }
  func.func @transform_4(%arg0: i32) -> (i32, i32) {
    %c0_i32 = arith.constant 0 : i32
    %c0_i32_0 = arith.constant 0 : i32
    %c0_i32_1 = arith.constant 0 : i32
    return %c0_i32, %c0_i32_0 : i32, i32
  }
  func.func @transform_5(%arg0: i32) -> (i32, i32) {
    %c0_i32 = arith.constant 0 : i32
    %c0_i32_0 = arith.constant 0 : i32
    %c0_i32_1 = arith.constant 0 : i32
    return %c0_i32, %c0_i32_0 : i32, i32
  }
  func.func @transform_6(%arg0: i32) -> (i32, i32, i32) {
    %c0_i32 = arith.constant 0 : i32
    %c0_i32_0 = arith.constant 0 : i32
    %c0_i32_1 = arith.constant 0 : i32
    %c0_i32_2 = arith.constant 0 : i32
    return %c0_i32, %c0_i32_0, %c0_i32_1 : i32, i32, i32
  }
  func.func @transform_7(%arg0: i32) -> (i32, i32) {
    %c0_i32 = arith.constant 0 : i32
    %c0_i32_0 = arith.constant 0 : i32
    %c0_i32_1 = arith.constant 0 : i32
    return %c0_i32, %c0_i32_0 : i32, i32
  }
  func.func @transform_8(%arg0: i32) -> (i32, i32) {
    %c0_i32 = arith.constant 0 : i32
    %c0_i32_0 = arith.constant 0 : i32
    %c0_i32_1 = arith.constant 0 : i32
    return %c0_i32, %c0_i32_0 : i32, i32
  }
  func.func @transform_9(%arg0: i32) -> (i32, i32) {
    %c0_i32 = arith.constant 0 : i32
    %c0_i32_0 = arith.constant 0 : i32
    %c0_i32_1 = arith.constant 0 : i32
    return %c0_i32, %c0_i32_0 : i32, i32
  }
  func.func @transform_10(%arg0: i32) -> (i32, i32, i32) {
    %c0_i32 = arith.constant 0 : i32
    %c0_i32_0 = arith.constant 0 : i32
    %c0_i32_1 = arith.constant 0 : i32
    return %arg0, %c0_i32, %c0_i32_0 : i32, i32, i32
  }
}

</mosaic_0001>

<llo_original>
// kernel: tpu_custom_call.1
$region0: #{tpu_custom_call.1}
  #allocation0 [shape = 'u32[]', space=smem, size = 0x4, offset = 0x4, fixed_abs, tag = 'smem constant byte address 0x4 - core index']
  #allocation1 [shape = 'u32[72,128]{1,0:T(1,128)}', space=vmem, size = 0x9000, scoped, tag = 'internal scratch']
  %s0 = inlined_call_operand.vmem [shape: bf16[2,8,256], index: 0, kind: input, shape index: {}]
  %s1 = inlined_call_operand.vmem [shape: bf16[8,8], index: 1, kind: input, shape index: {}]
  %s2 = inlined_call_operand.vmem [shape: f32[8,1], index: 2, kind: input, shape index: {}]
  %s3 = inlined_call_operand.vmem [shape: bf16[256,16], index: 3, kind: input, shape index: {}]
  %s4 = inlined_call_operand.vmem [shape: bf16[72,8], index: 4, kind: input, shape index: {}]
  %s5 = inlined_call_operand.vmem [shape: f32[8,1], index: 5, kind: input, shape index: {}]
  %s6 = inlined_call_operand.vmem [shape: f32[9,16,16], index: 6, kind: input, shape index: {}]
  %s7 = inlined_call_operand.vmem [shape: bf16[8,8], index: 7, kind: input, shape index: {}]
  %s8 = inlined_call_operand.vmem [shape: f32[8,1], index: 8, kind: input, shape index: {}]
  %s9 = inlined_call_operand.vmem [shape: bf16[16,256], index: 9, kind: input, shape index: {}]
  %s10 = inlined_call_operand.hbm [shape: f32[2,8,256], index: 10, kind: output, shape index: {}]
  %s11 = sld [smem:[#allocation0]]
  $region73: #{tpu_custom_call.1} parent=0
    _
  %s13 = ssub.s32 1, %s11
  %s14 = scalar_select 0, %s13, %s11
  $region1: #{tpu_custom_call.1} parent=0
    #allocation2 [shape = 'u8[16384]{0}', space=vmem, size = 0x4000, scoped, tag = 'output window, operand 0']
    #allocation3 [shape = 's32[2]{0}', space=sflag, size = 0x8, scoped, tag = 'scoped memory for tpu_custom_call.1']
    %15 = vsyncpa [#allocation3], 0
    %s16 = scalar_lea.sflag [#allocation3], 1
    %17 = vsyncpa %s16, 0
    loop: start=0, step=1, limit=4
    $region2: #{tpu_custom_call.1} parent=1 // loop_pre_header
      _
    $region3: #{tpu_custom_call.1} parent=1 // loop_header
      %s19 = sphi 0, %s23
      %p20 = scmp.ge.s32.totalorder %s19, 4
      %s29 = sphi 0, %s31
      %s32 = sphi 0, %s29
      %s33 = sphi 0, %s32
      %s49 = sphi 0, %s33
      %s53 = sphi 0, %s53
      %s55 = sphi 0, %s53
      %s56 = sphi 0, %s55
      %s70 = sphi 0, %s56
      %s74 = sphi 0, %s74
      %s76 = sphi 0, %s74
      %s77 = sphi 0, %s76
      %s91 = sphi 0, %s77
      %s95 = sphi 0, %s95
      %s97 = sphi 0, %s95
      %s98 = sphi 0, %s97
      %s112 = sphi 0, %s98
      %s116 = sphi 0, %s116
      %s118 = sphi 0, %s116
      %s119 = sphi 0, %s118
      %s133 = sphi 0, %s119
      %s137 = sphi 0, %s137
      %s139 = sphi 0, %s137
      %s140 = sphi 0, %s139
      %s154 = sphi 0, %s140
      %s158 = sphi 0, %s158
      %s160 = sphi 0, %s158
      %s161 = sphi 0, %s160
      %s175 = sphi 0, %s161
      %s179 = sphi 0, %s179
      %s181 = sphi 0, %s179
      %s182 = sphi 0, %s181
      %s196 = sphi 0, %s182
      %s200 = sphi 0, %s200
      %s202 = sphi 0, %s200
      %s203 = sphi 0, %s202
      %s217 = sphi 0, %s203
      %s221 = sphi 0, %s221
      %s223 = sphi 0, %s221
      %s224 = sphi 0, %s223
      %s238 = sphi 0, %s224
      %s244 = sphi 0, %s246
      %s247 = sphi 0, %s244
      %s248 = sphi 0, %s247
      %s264 = sphi 0, %s248
    $region4: #{tpu_custom_call.1} parent=1 // loop_header_branch
      %22 = sbr.rel (%p20) target = $region8
    $region5: #{tpu_custom_call.1} parent=1 // loop_body
      %s24 = ssub.s32 %s19, 1
      %s25 = ssub.s32 %s19, 2
      %s26 = sadd.s32 %s19, 1
      %s27 = ssub.s32 %s19, %s26
      %p28 = scmp.eq.s32.totalorder %s27, 0
      %s30 = sadd.s32 %s29, 1
      %s31 = scalar_select %p28, %s29, %s30
      %p34 = pneg %p28
      %p35 = scmp.eq.s32.totalorder %s19, 1
      %p36 = por %p34, %p35
      %p37 = scmp.ne.s32.totalorder %s29, %s32
      %p38 = scmp.eq.s32.totalorder %s19, 0
      %p39 = por %p37, %p38
      %p40 = scmp.ne.s32.totalorder %s29, %s32
      %p41 = scmp.eq.s32.totalorder %s24, 1
      %p42 = por %p40, %p41
      %p43 = scmp.ne.s32.totalorder %s32, %s33
      %p44 = scmp.eq.s32.totalorder %s24, 0
      %p45 = por %p43, %p44
      %p46 = scmp.ne.s32.totalorder %s32, %s33
      %p47 = scmp.eq.s32.totalorder %s25, 1
      %p48 = por %p46, %p47
      %p50 = scmp.ne.s32.totalorder %s33, %s49
      %p51 = scmp.eq.s32.totalorder %s25, 0
      %p52 = por %p50, %p51
      %s54 = sadd.s32 %s53, 1
      %p57 = scmp.eq.s32.totalorder %s19, 1
      %p58 = scmp.ne.s32.totalorder %s53, %s55
      %p59 = scmp.eq.s32.totalorder %s19, 0
      %p60 = por %p58, %p59
      %p61 = scmp.ne.s32.totalorder %s53, %s55
      %p62 = scmp.eq.s32.totalorder %s24, 1
      %p63 = por %p61, %p62
      %p64 = scmp.ne.s32.totalorder %s55, %s56
      %p65 = scmp.eq.s32.totalorder %s24, 0
      %p66 = por %p64, %p65
      %p67 = scmp.ne.s32.totalorder %s55, %s56
      %p68 = scmp.eq.s32.totalorder %s25, 1
      %p69 = por %p67, %p68
      %p71 = scmp.ne.s32.totalorder %s56, %s70
      %p72 = scmp.eq.s32.totalorder %s25, 0
      %p73 = por %p71, %p72
      %s75 = sadd.s32 %s74, 1
      %p78 = scmp.eq.s32.totalorder %s19, 1
      %p79 = scmp.ne.s32.totalorder %s74, %s76
      %p80 = scmp.eq.s32.totalorder %s19, 0
      %p81 = por %p79, %p80
      %p82 = scmp.ne.s32.totalorder %s74, %s76
      %p83 = scmp.eq.s32.totalorder %s24, 1
      %p84 = por %p82, %p83
      %p85 = scmp.ne.s32.totalorder %s76, %s77
      %p86 = scmp.eq.s32.totalorder %s24, 0
      %p87 = por %p85, %p86
      %p88 = scmp.ne.s32.totalorder %s76, %s77
      %p89 = scmp.eq.s32.totalorder %s25, 1
      %p90 = por %p88, %p89
      %p92 = scmp.ne.s32.totalorder %s77, %s91
      %p93 = scmp.eq.s32.totalorder %s25, 0
      %p94 = por %p92, %p93
      %s96 = sadd.s32 %s95, 1
      %p99 = scmp.eq.s32.totalorder %s19, 1
      %p100 = scmp.ne.s32.totalorder %s95, %s97
      %p101 = scmp.eq.s32.totalorder %s19, 0
      %p102 = por %p100, %p101
      %p103 = scmp.ne.s32.totalorder %s95, %s97
      %p104 = scmp.eq.s32.totalorder %s24, 1
      %p105 = por %p103, %p104
      %p106 = scmp.ne.s32.totalorder %s97, %s98
      %p107 = scmp.eq.s32.totalorder %s24, 0
      %p108 = por %p106, %p107
      %p109 = scmp.ne.s32.totalorder %s97, %s98
      %p110 = scmp.eq.s32.totalorder %s25, 1
      %p111 = por %p109, %p110
      %p113 = scmp.ne.s32.totalorder %s98, %s112
      %p114 = scmp.eq.s32.totalorder %s25, 0
      %p115 = por %p113, %p114
      %s117 = sadd.s32 %s116, 1
      %p120 = scmp.eq.s32.totalorder %s19, 1
      %p121 = scmp.ne.s32.totalorder %s116, %s118
      %p122 = scmp.eq.s32.totalorder %s19, 0
      %p123 = por %p121, %p122
      %p124 = scmp.ne.s32.totalorder %s116, %s118
      %p125 = scmp.eq.s32.totalorder %s24, 1
      %p126 = por %p124, %p125
      %p127 = scmp.ne.s32.totalorder %s118, %s119
      %p128 = scmp.eq.s32.totalorder %s24, 0
      %p129 = por %p127, %p128
      %p130 = scmp.ne.s32.totalorder %s118, %s119
      %p131 = scmp.eq.s32.totalorder %s25, 1
      %p132 = por %p130, %p131
      %p134 = scmp.ne.s32.totalorder %s119, %s133
      %p135 = scmp.eq.s32.totalorder %s25, 0
      %p136 = por %p134, %p135
      %s138 = sadd.s32 %s137, 1
      %p141 = scmp.eq.s32.totalorder %s19, 1
      %p142 = scmp.ne.s32.totalorder %s137, %s139
      %p143 = scmp.eq.s32.totalorder %s19, 0
      %p144 = por %p142, %p143
      %p145 = scmp.ne.s32.totalorder %s137, %s139
      %p146 = scmp.eq.s32.totalorder %s24, 1
      %p147 = por %p145, %p146
      %p148 = scmp.ne.s32.totalorder %s139, %s140
      %p149 = scmp.eq.s32.totalorder %s24, 0
      %p150 = por %p148, %p149
      %p151 = scmp.ne.s32.totalorder %s139, %s140
      %p152 = scmp.eq.s32.totalorder %s25, 1
      %p153 = por %p151, %p152
      %p155 = scmp.ne.s32.totalorder %s140, %s154
      %p156 = scmp.eq.s32.totalorder %s25, 0
      %p157 = por %p155, %p156
      %s159 = sadd.s32 %s158, 1
      %p162 = scmp.eq.s32.totalorder %s19, 1
      %p163 = scmp.ne.s32.totalorder %s158, %s160
      %p164 = scmp.eq.s32.totalorder %s19, 0
      %p165 = por %p163, %p164
      %p166 = scmp.ne.s32.totalorder %s158, %s160
      %p167 = scmp.eq.s32.totalorder %s24, 1
      %p168 = por %p166, %p167
      %p169 = scmp.ne.s32.totalorder %s160, %s161
      %p170 = scmp.eq.s32.totalorder %s24, 0
      %p171 = por %p169, %p170
      %p172 = scmp.ne.s32.totalorder %s160, %s161
      %p173 = scmp.eq.s32.totalorder %s25, 1
      %p174 = por %p172, %p173
      %p176 = scmp.ne.s32.totalorder %s161, %s175
      %p177 = scmp.eq.s32.totalorder %s25, 0
      %p178 = por %p176, %p177
      %s180 = sadd.s32 %s179, 1
      %p183 = scmp.eq.s32.totalorder %s19, 1
      %p184 = scmp.ne.s32.totalorder %s179, %s181
      %p185 = scmp.eq.s32.totalorder %s19, 0
      %p186 = por %p184, %p185
      %p187 = scmp.ne.s32.totalorder %s179, %s181
      %p188 = scmp.eq.s32.totalorder %s24, 1
      %p189 = por %p187, %p188
      %p190 = scmp.ne.s32.totalorder %s181, %s182
      %p191 = scmp.eq.s32.totalorder %s24, 0
      %p192 = por %p190, %p191
      %p193 = scmp.ne.s32.totalorder %s181, %s182
      %p194 = scmp.eq.s32.totalorder %s25, 1
      %p195 = por %p193, %p194
      %p197 = scmp.ne.s32.totalorder %s182, %s196
      %p198 = scmp.eq.s32.totalorder %s25, 0
      %p199 = por %p197, %p198
      %s201 = sadd.s32 %s200, 1
      %p204 = scmp.eq.s32.totalorder %s19, 1
      %p205 = scmp.ne.s32.totalorder %s200, %s202
      %p206 = scmp.eq.s32.totalorder %s19, 0
      %p207 = por %p205, %p206
      %p208 = scmp.ne.s32.totalorder %s200, %s202
      %p209 = scmp.eq.s32.totalorder %s24, 1
      %p210 = por %p208, %p209
      %p211 = scmp.ne.s32.totalorder %s202, %s203
      %p212 = scmp.eq.s32.totalorder %s24, 0
      %p213 = por %p211, %p212
      %p214 = scmp.ne.s32.totalorder %s202, %s203
      %p215 = scmp.eq.s32.totalorder %s25, 1
      %p216 = por %p214, %p215
      %p218 = scmp.ne.s32.totalorder %s203, %s217
      %p219 = scmp.eq.s32.totalorder %s25, 0
      %p220 = por %p218, %p219
      %s222 = sadd.s32 %s221, 1
      %p225 = scmp.eq.s32.totalorder %s19, 1
      %p226 = scmp.ne.s32.totalorder %s221, %s223
      %p227 = scmp.eq.s32.totalorder %s19, 0
      %p228 = por %p226, %p227
      %p229 = scmp.ne.s32.totalorder %s221, %s223
      %p230 = scmp.eq.s32.totalorder %s24, 1
      %p231 = por %p229, %p230
      %p232 = scmp.ne.s32.totalorder %s223, %s224
      %p233 = scmp.eq.s32.totalorder %s24, 0
      %p234 = por %p232, %p233
      %p235 = scmp.ne.s32.totalorder %s223, %s224
      %p236 = scmp.eq.s32.totalorder %s25, 1
      %p237 = por %p235, %p236
      %p239 = scmp.ne.s32.totalorder %s224, %s238
      %p240 = scmp.eq.s32.totalorder %s25, 0
      %p241 = por %p239, %p240
      %s242 = ssub.s32 %s19, %s26
      %p243 = scmp.eq.s32.totalorder %s242, 0
      %s245 = sadd.s32 %s244, 1
      %s246 = scalar_select %p243, %s244, %s245
      %p249 = pneg %p243
      %p250 = scmp.eq.s32.totalorder %s19, 1
      %p251 = por %p249, %p250
      %p252 = scmp.ne.s32.totalorder %s244, %s247
      %p253 = scmp.eq.s32.totalorder %s19, 0
      %p254 = por %p252, %p253
      %p255 = scmp.ne.s32.totalorder %s244, %s247
      %p256 = scmp.eq.s32.totalorder %s24, 1
      %p257 = por %p255, %p256
      %p258 = scmp.ne.s32.totalorder %s247, %s248
      %p259 = scmp.eq.s32.totalorder %s24, 0
      %p260 = por %p258, %p259
      %p261 = scmp.ne.s32.totalorder %s247, %s248
      %p262 = scmp.eq.s32.totalorder %s25, 1
      %p263 = por %p261, %p262
      %p265 = scmp.ne.s32.totalorder %s248, %s264
      %p266 = scmp.eq.s32.totalorder %s25, 0
      %p267 = por %p265, %p266
      %p268 = scmp.le.s32.totalorder 1, %s19
      %p269 = scmp.lt.s32.totalorder %s19, 3
      %p270 = pnand %p268, %p269
      %p271 = pneg %p270
      // Predicated region
      $region9: #{tpu_custom_call.1} parent=5 // pred_check
        _
      $region10: #{tpu_custom_call.1} parent=5 // pred_check_branch
        %273 = sbr.rel (%p270) target = $region12
      $region11: #{tpu_custom_call.1} parent=5 // pred_region
        %s274 = ssub.s32 %s19, 1
        // Predicated region
        $region13: #{tpu_custom_call.1} parent=11 // pred_check
          %p275 = pneg %p66
        $region14: #{tpu_custom_call.1} parent=11 // pred_check_branch
          %277 = sbr.rel (%p275) target = $region16
        $region15: #{tpu_custom_call.1} parent=11 // pred_region
          _
        $region16: #{tpu_custom_call.1} parent=11 // pred_fallthru
          _
        // Predicated region
        $region17: #{tpu_custom_call.1} parent=11 // pred_check
          %p278 = pneg %p87
        $region18: #{tpu_custom_call.1} parent=11 // pred_check_branch
          %280 = sbr.rel (%p278) target = $region20
        $region19: #{tpu_custom_call.1} parent=11 // pred_region
          _
        $region20: #{tpu_custom_call.1} parent=11 // pred_fallthru
          _
        // Predicated region
        $region21: #{tpu_custom_call.1} parent=11 // pred_check
          %p281 = pneg %p108
        $region22: #{tpu_custom_call.1} parent=11 // pred_check_branch
          %283 = sbr.rel (%p281) target = $region24
        $region23: #{tpu_custom_call.1} parent=11 // pred_region
          _
        $region24: #{tpu_custom_call.1} parent=11 // pred_fallthru
          _
        // Predicated region
        $region25: #{tpu_custom_call.1} parent=11 // pred_check
          %p284 = pneg %p129
        $region26: #{tpu_custom_call.1} parent=11 // pred_check_branch
          %286 = sbr.rel (%p284) target = $region28
        $region27: #{tpu_custom_call.1} parent=11 // pred_region
          _
        $region28: #{tpu_custom_call.1} parent=11 // pred_fallthru
          _
        // Predicated region
        $region29: #{tpu_custom_call.1} parent=11 // pred_check
          %p287 = pneg %p150
        $region30: #{tpu_custom_call.1} parent=11 // pred_check_branch
          %289 = sbr.rel (%p287) target = $region32
        $region31: #{tpu_custom_call.1} parent=11 // pred_region
          _
        $region32: #{tpu_custom_call.1} parent=11 // pred_fallthru
          _
        // Predicated region
        $region33: #{tpu_custom_call.1} parent=11 // pred_check
          %p290 = pneg %p171
        $region34: #{tpu_custom_call.1} parent=11 // pred_check_branch
          %292 = sbr.rel (%p290) target = $region36
        $region35: #{tpu_custom_call.1} parent=11 // pred_region
          _
        $region36: #{tpu_custom_call.1} parent=11 // pred_fallthru
          _
        // Predicated region
        $region37: #{tpu_custom_call.1} parent=11 // pred_check
          %p293 = pneg %p192
        $region38: #{tpu_custom_call.1} parent=11 // pred_check_branch
          %295 = sbr.rel (%p293) target = $region40
        $region39: #{tpu_custom_call.1} parent=11 // pred_region
          _
        $region40: #{tpu_custom_call.1} parent=11 // pred_fallthru
          _
        // Predicated region
        $region41: #{tpu_custom_call.1} parent=11 // pred_check
          %p296 = pneg %p213
        $region42: #{tpu_custom_call.1} parent=11 // pred_check_branch
          %298 = sbr.rel (%p296) target = $region44
        $region43: #{tpu_custom_call.1} parent=11 // pred_region
          _
        $region44: #{tpu_custom_call.1} parent=11 // pred_fallthru
          _
        // Predicated region
        $region45: #{tpu_custom_call.1} parent=11 // pred_check
          %p299 = pneg %p234
        $region46: #{tpu_custom_call.1} parent=11 // pred_check_branch
          %301 = sbr.rel (%p299) target = $region48
        $region47: #{tpu_custom_call.1} parent=11 // pred_region
          _
        $region48: #{tpu_custom_call.1} parent=11 // pred_fallthru
          _
      $region12: #{tpu_custom_call.1} parent=5 // pred_fallthru
        _
      %p302 = scmp.lt.s32.totalorder %s19, 2
      // Predicated region
      $region49: #{tpu_custom_call.1} parent=5 // pred_check
        %p303 = pneg %p302
      $region50: #{tpu_custom_call.1} parent=5 // pred_check_branch
        %305 = sbr.rel (%p303) target = $region52
      $region51: #{tpu_custom_call.1} parent=5 // pred_region
        // Predicated region
        $region53: #{tpu_custom_call.1} parent=51 // pred_check
          %p306 = pneg %p39
        $region54: #{tpu_custom_call.1} parent=51 // pred_check_branch
          %308 = sbr.rel (%p306) target = $region56
        $region55: #{tpu_custom_call.1} parent=51 // pred_region
          %p309 = scmp.lt.s32.totalorder %s19, 1
          %s310 = scalar_select %p309, %s19, 1
          %s311 = smul.addr %s310, 2
          %s312 = smul.addr %s311, 4
          %s313 = scalar_lea.vmem %s0, %s312
        $region56: #{tpu_custom_call.1} parent=51 // pred_fallthru
          _
      $region52: #{tpu_custom_call.1} parent=5 // pred_fallthru
        _
      %p314 = scmp.le.s32.totalorder 1, %s19
      %p315 = scmp.lt.s32.totalorder %s19, 3
      %p316 = pnand %p314, %p315
      %p317 = pneg %p316
      // Predicated region
      $region57: #{tpu_custom_call.1} parent=5 // pred_check
        _
      $region58: #{tpu_custom_call.1} parent=5 // pred_check_branch
        %319 = sbr.rel (%p316) target = $region60
      $region59: #{tpu_custom_call.1} parent=5 // pred_region
        %s320 = ssub.s32 %s19, 1
        %p321 = scmp.lt.s32.totalorder %s24, 1
        %s322 = scalar_select %p321, %s24, 1
        %s323 = smul.addr %s322, 2
        %s324 = smul.addr %s323, 4
        %s325 = scalar_lea.vmem %s0, %s324
        %p326 = pneg %p45
        %p327 = pneg %p42
        %p328 = pneg %p66
        %p329 = pneg %p63
        %p330 = pneg %p87
        %p331 = pneg %p84
        %p332 = pneg %p108
        %p333 = pneg %p105
        %p334 = pneg %p129
        %p335 = pneg %p126
        %p336 = pneg %p150
        %p337 = pneg %p147
        %p338 = pneg %p171
        %p339 = pneg %p168
        %p340 = pneg %p192
        %p341 = pneg %p189
        %p342 = pneg %p213
        %p343 = pneg %p210
        %p344 = pneg %p234
        %p345 = pneg %p231
        %p346 = pneg %p260
        %p347 = pneg %p257
        %s348 = sand.u32 %s247, 1
        %s349 = scalar_lea.sflag [#allocation3], %s348
        %s350 = sand.u32 %s247, 1
        %s351 = smul.addr %s350, 16
        %s352 = scalar_lea.vmem [#allocation2], %s351
        %p353 = scmp.lt.s32.totalorder %s24, 1
        %s354 = scalar_select %p353, %s24, 1
        %s355 = smul.addr %s354, 2
        %s356 = smul.addr %s355, 4
        %s357 = scalar_lea.vmem %s0, %s356
        %v359 = vld [vmem:[%s357] sm:$0xff]
        %v360 = vld [vmem:[%s1] sm:$0xf]
        %v361 = vld [vmem:[%s2] sm:$0xff]
        %363 = vset.pattern.permute.xlu0 0
        %364 = vperm.xlu0 %363, %v361
        %v365 = vpop.permute.xlu0 %364
        %v368 = vunpack.c.l.b16 %v359
        %v369 = vunpack.c.h.b16 %v359
        %v370 = vpack.c.b16 %v368, %v368
        %v371 = vpack.c.b16 %v369, %v369
        %vm372 = vcmask 64512
        %v374 = vsel %vm372, %v360, 0
        %vm376 = vcmask 1043456
        %v378 = vsel %vm376, %v370, 0
        %v381 = vsel %vm376, %v371, 0
        %383 = vmatpush.bf16.msra.mxu0 0
        %384 = vmatpush.bf16.msra.mxu0 0
        %385 = vmatpush.bf16.msra.mxu0 0
        %386 = vmatpush.bf16.msra.mxu0 0
        %387 = vmatpush.bf16.msra.mxu0 0
        %388 = vmatpush.bf16.msra.mxu0 0
        %389 = vmatpush.bf16.msra.mxu0 0
        %390 = vmatpush.bf16.msra.mxu0 %v378
        %391 = vmatmul.bf16.gmra.mxu0 %v374
        %v392 = vpop.f32.mrf.mxu0
        %v393 = vadd.f32 %v365, %v392
        %v394 = vpop.f32.mrf.mxu0
        %395 = vdwg.mxu0
        %396 = vmatpush.bf16.msra.mxu0 0
        %397 = vmatpush.bf16.msra.mxu0 0
        %398 = vmatpush.bf16.msra.mxu0 0
        %399 = vmatpush.bf16.msra.mxu0 0
        %400 = vmatpush.bf16.msra.mxu0 0
        %401 = vmatpush.bf16.msra.mxu0 0
        %402 = vmatpush.bf16.msra.mxu0 0
        %403 = vmatpush.bf16.msra.mxu0 %v381
        %404 = vmatmul.bf16.gmra.mxu0 %v374
        %v405 = vpop.f32.mrf.mxu0
        %v406 = vadd.f32 %v365, %v405
        %v407 = vpop.f32.mrf.mxu0
        %408 = vdwg.mxu0
        %v409 = vxor.u32 %v393, 2147483648
        %v410 = vxor.u32 %v406, 2147483648
        %v411 = vmul.f32 %v409, 1.442695
        %v412 = vpow.pop %v411
        %v413 = vmul.f32 %v410, 1.442695
        %v414 = vpow.pop %v413
        %v415 = vadd.f32 %v412, 1.0
        %v416 = vadd.f32 %v414, 1.0
        %v417 = vrcp.pop %v415
        %v418 = vmul.f32 %v415, %v417
        %v419 = vsub.f32 1.0, %v418
        %v420 = vmul.f32 %v417, %v419
        %v421 = vadd.f32 %v417, %v420
        %vm422 = vweird.f32 %v415
        %vm423 = vweird.f32 %v417
        %vm424 = vmor %vm422, %vm423
        %v425 = vsel %vm424, %v417, %v421
        %v426 = vand.u32 2147483647, %v415
        %vm427 = vcmp.eq.f32.partialorder %v426, 8.507059e+37
        %v428 = vand.u32 %v415, 2147483648
        %v429 = vor.u32 1.1754944e-38, %v428
        %v430 = vsel %vm427, %v429, %v425
        %v431 = vmul.f32 1.0, %v430
        %v432 = vrcp.pop %v416
        %v433 = vmul.f32 %v416, %v432
        %v434 = vsub.f32 1.0, %v433
        %v435 = vmul.f32 %v432, %v434
        %v436 = vadd.f32 %v432, %v435
        %vm437 = vweird.f32 %v416
        %vm438 = vweird.f32 %v432
        %vm439 = vmor %vm437, %vm438
        %v440 = vsel %vm439, %v432, %v436
        %v441 = vand.u32 2147483647, %v416
        %vm442 = vcmp.eq.f32.partialorder %v441, 8.507059e+37
        %v443 = vand.u32 %v416, 2147483648
        %v444 = vor.u32 1.1754944e-38, %v443
        %v445 = vsel %vm442, %v444, %v440
        %v446 = vmul.f32 1.0, %v445
        %v447 = vmul.f32 %v393, %v431
        %v448 = vmul.f32 %v406, %v446
        %v449 = vpack.c.bf16 %v447, %v447
        %v450 = vpack.c.bf16 %v448, %v448
        %v451 = vld [vmem:[%s3] sm:$0xf]
        %v452 = vld [vmem:[%s3 + $0x4] sm:$0xf]
        %v453 = vld [vmem:[%s3 + $0x8] sm:$0xf]
        %v454 = vld [vmem:[%s3 + $0xc] sm:$0xf]
        %v455 = vld [vmem:[%s3 + $0x10] sm:$0xf]
        %v456 = vld [vmem:[%s3 + $0x14] sm:$0xf]
        %v457 = vld [vmem:[%s3 + $0x18] sm:$0xf]
        %v458 = vld [vmem:[%s3 + $0x1c] sm:$0xf]
        %v459 = vld [vmem:[%s3 + $0x20] sm:$0xf]
        %v460 = vld [vmem:[%s3 + $0x24] sm:$0xf]
        %v461 = vld [vmem:[%s3 + $0x28] sm:$0xf]
        %v462 = vld [vmem:[%s3 + $0x2c] sm:$0xf]
        %v463 = vld [vmem:[%s3 + $0x30] sm:$0xf]
        %v464 = vld [vmem:[%s3 + $0x34] sm:$0xf]
        %v465 = vld [vmem:[%s3 + $0x38] sm:$0xf]
        %v466 = vld [vmem:[%s3 + $0x3c] sm:$0xf]
        %v467 = vld [vmem:[%s3 + $0x40] sm:$0xf]
        %v468 = vld [vmem:[%s3 + $0x44] sm:$0xf]
        %v469 = vld [vmem:[%s3 + $0x48] sm:$0xf]
        %v470 = vld [vmem:[%s3 + $0x4c] sm:$0xf]
        %v471 = vld [vmem:[%s3 + $0x50] sm:$0xf]
        %v472 = vld [vmem:[%s3 + $0x54] sm:$0xf]
        %v473 = vld [vmem:[%s3 + $0x58] sm:$0xf]
        %v474 = vld [vmem:[%s3 + $0x5c] sm:$0xf]
        %v475 = vld [vmem:[%s3 + $0x60] sm:$0xf]
        %v476 = vld [vmem:[%s3 + $0x64] sm:$0xf]
        %v477 = vld [vmem:[%s3 + $0x68] sm:$0xf]
        %v478 = vld [vmem:[%s3 + $0x6c] sm:$0xf]
        %v479 = vld [vmem:[%s3 + $0x70] sm:$0xf]
        %v480 = vld [vmem:[%s3 + $0x74] sm:$0xf]
        %v481 = vld [vmem:[%s3 + $0x78] sm:$0xf]
        %v482 = vld [vmem:[%s3 + $0x7c] sm:$0xf]
        %v515 = vunpack.c.l.b16 %v451
        %v516 = vunpack.c.l.b16 %v452
        %v517 = vunpack.c.l.b16 %v453
        %v518 = vunpack.c.l.b16 %v454
        %v519 = vunpack.c.l.b16 %v455
        %v520 = vunpack.c.l.b16 %v456
        %v521 = vunpack.c.l.b16 %v457
        %v522 = vunpack.c.l.b16 %v458
        %v523 = vunpack.c.l.b16 %v459
        %v524 = vunpack.c.l.b16 %v460
        %v525 = vunpack.c.l.b16 %v461
        %v526 = vunpack.c.l.b16 %v462
        %v527 = vunpack.c.l.b16 %v463
        %v528 = vunpack.c.l.b16 %v464
        %v529 = vunpack.c.l.b16 %v465
        %v530 = vunpack.c.l.b16 %v466
        %v531 = vunpack.c.l.b16 %v467
        %v532 = vunpack.c.l.b16 %v468
        %v533 = vunpack.c.l.b16 %v469
        %v534 = vunpack.c.l.b16 %v470
        %v535 = vunpack.c.l.b16 %v471
        %v536 = vunpack.c.l.b16 %v472
        %v537 = vunpack.c.l.b16 %v473
        %v538 = vunpack.c.l.b16 %v474
        %v539 = vunpack.c.l.b16 %v475
        %v540 = vunpack.c.l.b16 %v476
        %v541 = vunpack.c.l.b16 %v477
        %v542 = vunpack.c.l.b16 %v478
        %v543 = vunpack.c.l.b16 %v479
        %v544 = vunpack.c.l.b16 %v480
        %v545 = vunpack.c.l.b16 %v481
        %v546 = vunpack.c.l.b16 %v482
        %v547 = vpack.c.b16 %v516, %v515
        %v548 = vpack.c.b16 %v518, %v517
        %v549 = vpack.c.b16 %v520, %v519
        %v550 = vpack.c.b16 %v522, %v521
        %v551 = vpack.c.b16 %v524, %v523
        %v552 = vpack.c.b16 %v526, %v525
        %v553 = vpack.c.b16 %v528, %v527
        %v554 = vpack.c.b16 %v530, %v529
        %v555 = vpack.c.b16 %v532, %v531
        %v556 = vpack.c.b16 %v534, %v533
        %v557 = vpack.c.b16 %v536, %v535
        %v558 = vpack.c.b16 %v538, %v537
        %v559 = vpack.c.b16 %v540, %v539
        %v560 = vpack.c.b16 %v542, %v541
        %v561 = vpack.c.b16 %v544, %v543
        %v562 = vpack.c.b16 %v546, %v545
        %579 = vmatpush.bf16.msra.mxu0 %v554
        %580 = vmatpush.bf16.msra.mxu0 %v553
        %581 = vmatpush.bf16.msra.mxu0 %v552
        %582 = vmatpush.bf16.msra.mxu0 %v551
        %583 = vmatpush.bf16.msra.mxu0 %v550
        %584 = vmatpush.bf16.msra.mxu0 %v549
        %585 = vmatpush.bf16.msra.mxu0 %v548
        %586 = vmatpush.bf16.msra.mxu0 %v547
        %587 = vmatmul.bf16.gmra.mxu0 %v449
        %v588 = vpop.f32.mrf.mxu0
        %v589 = vadd.f32 0.0, %v588
        %v590 = vpop.f32.mrf.mxu0
        %591 = vdwg.mxu0
        %592 = vmatpush.bf16.msra.mxu0 %v562
        %593 = vmatpush.bf16.msra.mxu0 %v561
        %594 = vmatpush.bf16.msra.mxu0 %v560
        %595 = vmatpush.bf16.msra.mxu0 %v559
        %596 = vmatpush.bf16.msra.mxu0 %v558
        %597 = vmatpush.bf16.msra.mxu0 %v557
        %598 = vmatpush.bf16.msra.mxu0 %v556
        %599 = vmatpush.bf16.msra.mxu0 %v555
        %600 = vmatmul.bf16.gmra.mxu0 %v450
        %v601 = vpop.f32.mrf.mxu0
        %v602 = vadd.f32 %v589, %v601
        %v603 = vpop.f32.mrf.mxu0
        %604 = vdwg.mxu0
        %v605 = vld [vmem:[%s4] sm:$0xf]
        %v606 = vld [vmem:[%s4 + $0x4] sm:$0xf]
        %v607 = vld [vmem:[%s4 + $0x8] sm:$0xf]
        %v608 = vld [vmem:[%s4 + $0xc] sm:$0xf]
        %v609 = vld [vmem:[%s4 + $0x10] sm:$0xf]
        %v610 = vld [vmem:[%s4 + $0x14] sm:$0xf]
        %v611 = vld [vmem:[%s4 + $0x18] sm:$0xf]
        %v612 = vld [vmem:[%s4 + $0x1c] sm:$0xf]
        %v613 = vld [vmem:[%s4 + $0x20] sm:$0xf]
        %v614 = vpack.c.bf16 %v602, %v602
        %v624 = vunpack.c.l.b16 %v605
        %v625 = vunpack.c.l.b16 %v606
        %v626 = vunpack.c.l.b16 %v607
        %v627 = vunpack.c.l.b16 %v608
        %v628 = vunpack.c.l.b16 %v609
        %v629 = vunpack.c.l.b16 %v610
        %v630 = vunpack.c.l.b16 %v611
        %v631 = vunpack.c.l.b16 %v612
        %v632 = vunpack.c.l.b16 %v613
        %v633 = vpack.c.b16 %v625, %v624
        %v634 = vpack.c.b16 %v627, %v626
        %v635 = vpack.c.b16 %v629, %v628
        %v636 = vpack.c.b16 %v631, %v630
        %v637 = vpack.c.b16 %v632, %v632
        %v639 = vsel %vm372, %v633, 0
        %v642 = vsel %vm372, %v634, 0
        %v645 = vsel %vm372, %v635, 0
        %v648 = vsel %vm372, %v636, 0
        %v651 = vsel %vm372, %v637, 0
        %v654 = vsel %vm376, %v614, 0
        %656 = vmatpush.bf16.msra.mxu0 0
        %657 = vmatpush.bf16.msra.mxu0 0
        %658 = vmatpush.bf16.msra.mxu0 0
        %659 = vmatpush.bf16.msra.mxu0 0
        %660 = vmatpush.bf16.msra.mxu0 0
        %661 = vmatpush.bf16.msra.mxu0 0
        %662 = vmatpush.bf16.msra.mxu0 0
        %663 = vmatpush.bf16.msra.mxu0 %v654
        %664 = vmatmul.bf16.gmra.mxu0 %v639
        %v665 = vpop.f32.mrf.mxu0
        %v666 = vadd.f32 0.0, %v665
        %v667 = vpop.f32.mrf.mxu0
        %v668 = vadd.f32 0.0, %v667
        %669 = vmatmul.bf16.gmra.mxu0 %v642
        %v670 = vpop.f32.mrf.mxu0
        %v671 = vadd.f32 0.0, %v670
        %v672 = vpop.f32.mrf.mxu0
        %v673 = vadd.f32 0.0, %v672
        %674 = vmatmul.bf16.gmra.mxu0 %v645
        %v675 = vpop.f32.mrf.mxu0
        %v676 = vadd.f32 0.0, %v675
        %v677 = vpop.f32.mrf.mxu0
        %v678 = vadd.f32 0.0, %v677
        %679 = vmatmul.bf16.gmra.mxu0 %v648
        %v680 = vpop.f32.mrf.mxu0
        %v681 = vadd.f32 0.0, %v680
        %v682 = vpop.f32.mrf.mxu0
        %v683 = vadd.f32 0.0, %v682
        %684 = vmatmul.bf16.gmra.mxu0 %v651
        %v685 = vpop.f32.mrf.mxu0
        %v686 = vadd.f32 0.0, %v685
        %v687 = vpop.f32.mrf.mxu0
        %688 = vdwg.mxu0
        %v689 = vld [vmem:[%s6] sm:$0xff]
        %v690 = vld [vmem:[%s6 + $0x8] sm:$0xff]
        %s691 = scalar_lea.vmem %s6, 16
        %v692 = vld [vmem:[%s691] sm:$0xff]
        %v693 = vld [vmem:[%s691 + $0x8] sm:$0xff]
        %vm694 = vcmask 130048
        %v696 = vsel %vm694, %v668, 0
        %698 = vmatpush.msra.mxu0 0.0
        %699 = vmatpush.msra.mxu0 0.0
        %700 = vmatpush.msra.mxu0 0.0
        %701 = vmatpush.msra.mxu0 0.0
        %702 = vmatpush.msra.mxu0 0.0
        %703 = vmatpush.msra.mxu0 0.0
        %704 = vmatpush.msra.mxu0 0.0
        %705 = vmatpush.msra.mxu0 0.0
        %706 = vmatpush.msra.mxu0 0.0
        %707 = vmatpush.msra.mxu0 0.0
        %708 = vmatpush.msra.mxu0 0.0
        %709 = vmatpush.msra.mxu0 0.0
        %710 = vmatpush.msra.mxu0 0.0
        %711 = vmatpush.msra.mxu0 0.0
        %712 = vmatpush.msra.mxu0 %v693
        %713 = vmatpush.msra.mxu0 %v692
        %714 = vmatmul.f32.gmra.mxu0 %v696
        %v715 = vpop.f32.mrf.mxu0
        %v716 = vadd.f32 0.0, %v715
        %717 = vdwg.mxu0
        %s718 = scalar_lea.vmem %s6, 32
        %v719 = vld [vmem:[%s718] sm:$0xff]
        %v720 = vld [vmem:[%s718 + $0x8] sm:$0xff]
        %s721 = scalar_lea.vmem %s6, 48
        %v722 = vld [vmem:[%s721] sm:$0xff]
        %v723 = vld [vmem:[%s721 + $0x8] sm:$0xff]
        %v725 = vsel %vm694, %v673, 0
        %727 = vmatpush.msra.mxu0 0.0
        %728 = vmatpush.msra.mxu0 0.0
        %729 = vmatpush.msra.mxu0 0.0
        %730 = vmatpush.msra.mxu0 0.0
        %731 = vmatpush.msra.mxu0 0.0
        %732 = vmatpush.msra.mxu0 0.0
        %733 = vmatpush.msra.mxu0 0.0
        %734 = vmatpush.msra.mxu0 0.0
        %735 = vmatpush.msra.mxu0 0.0
        %736 = vmatpush.msra.mxu0 0.0
        %737 = vmatpush.msra.mxu0 0.0
        %738 = vmatpush.msra.mxu0 0.0
        %739 = vmatpush.msra.mxu0 0.0
        %740 = vmatpush.msra.mxu0 0.0
        %741 = vmatpush.msra.mxu0 %v723
        %742 = vmatpush.msra.mxu0 %v722
        %743 = vmatmul.f32.gmra.mxu0 %v725
        %v744 = vpop.f32.mrf.mxu0
        %v745 = vadd.f32 0.0, %v744
        %746 = vdwg.mxu0
        %s747 = scalar_lea.vmem %s6, 64
        %v748 = vld [vmem:[%s747] sm:$0xff]
        %v749 = vld [vmem:[%s747 + $0x8] sm:$0xff]
        %s750 = scalar_lea.vmem %s6, 80
        %v751 = vld [vmem:[%s750] sm:$0xff]
        %v752 = vld [vmem:[%s750 + $0x8] sm:$0xff]
        %v754 = vsel %vm694, %v678, 0
        %756 = vmatpush.msra.mxu0 0.0
        %757 = vmatpush.msra.mxu0 0.0
        %758 = vmatpush.msra.mxu0 0.0
        %759 = vmatpush.msra.mxu0 0.0
        %760 = vmatpush.msra.mxu0 0.0
        %761 = vmatpush.msra.mxu0 0.0
        %762 = vmatpush.msra.mxu0 0.0
        %763 = vmatpush.msra.mxu0 0.0
        %764 = vmatpush.msra.mxu0 0.0
        %765 = vmatpush.msra.mxu0 0.0
        %766 = vmatpush.msra.mxu0 0.0
        %767 = vmatpush.msra.mxu0 0.0
        %768 = vmatpush.msra.mxu0 0.0
        %769 = vmatpush.msra.mxu0 0.0
        %770 = vmatpush.msra.mxu0 %v752
        %771 = vmatpush.msra.mxu0 %v751
        %772 = vmatmul.f32.gmra.mxu0 %v754
        %v773 = vpop.f32.mrf.mxu0
        %v774 = vadd.f32 0.0, %v773
        %775 = vdwg.mxu0
        %s776 = scalar_lea.vmem %s6, 96
        %v777 = vld [vmem:[%s776] sm:$0xff]
        %v778 = vld [vmem:[%s776 + $0x8] sm:$0xff]
        %s779 = scalar_lea.vmem %s6, 112
        %v780 = vld [vmem:[%s779] sm:$0xff]
        %v781 = vld [vmem:[%s779 + $0x8] sm:$0xff]
        %v783 = vsel %vm694, %v683, 0
        %785 = vmatpush.msra.mxu0 0.0
        %786 = vmatpush.msra.mxu0 0.0
        %787 = vmatpush.msra.mxu0 0.0
        %788 = vmatpush.msra.mxu0 0.0
        %789 = vmatpush.msra.mxu0 0.0
        %790 = vmatpush.msra.mxu0 0.0
        %791 = vmatpush.msra.mxu0 0.0
        %792 = vmatpush.msra.mxu0 0.0
        %793 = vmatpush.msra.mxu0 0.0
        %794 = vmatpush.msra.mxu0 0.0
        %795 = vmatpush.msra.mxu0 0.0
        %796 = vmatpush.msra.mxu0 0.0
        %797 = vmatpush.msra.mxu0 0.0
        %798 = vmatpush.msra.mxu0 0.0
        %799 = vmatpush.msra.mxu0 %v781
        %800 = vmatpush.msra.mxu0 %v780
        %801 = vmatmul.f32.gmra.mxu0 %v783
        %v802 = vpop.f32.mrf.mxu0
        %v803 = vadd.f32 0.0, %v802
        %804 = vdwg.mxu0
        %s805 = scalar_lea.vmem %s6, 128
        %v806 = vld [vmem:[%s805] sm:$0xff]
        %v807 = vld [vmem:[%s805 + $0x8] sm:$0xff]
        %v809 = vsel %vm694, %v686, 0
        %811 = vmatpush.msra.mxu0 0.0
        %812 = vmatpush.msra.mxu0 0.0
        %813 = vmatpush.msra.mxu0 0.0
        %814 = vmatpush.msra.mxu0 0.0
        %815 = vmatpush.msra.mxu0 0.0
        %816 = vmatpush.msra.mxu0 0.0
        %817 = vmatpush.msra.mxu0 0.0
        %818 = vmatpush.msra.mxu0 0.0
        %819 = vmatpush.msra.mxu0 0.0
        %820 = vmatpush.msra.mxu0 0.0
        %821 = vmatpush.msra.mxu0 0.0
        %822 = vmatpush.msra.mxu0 0.0
        %823 = vmatpush.msra.mxu0 0.0
        %824 = vmatpush.msra.mxu0 0.0
        %825 = vmatpush.msra.mxu0 %v807
        %826 = vmatpush.msra.mxu0 %v806
        %827 = vmatmul.f32.gmra.mxu0 %v809
        %v828 = vpop.f32.mrf.mxu0
        %v829 = vadd.f32 0.0, %v828
        %830 = vdwg.mxu0
        %v832 = vsel %vm694, %v666, 0
        %834 = vmatpush.msra.mxu0 0.0
        %835 = vmatpush.msra.mxu0 0.0
        %836 = vmatpush.msra.mxu0 0.0
        %837 = vmatpush.msra.mxu0 0.0
        %838 = vmatpush.msra.mxu0 0.0
        %839 = vmatpush.msra.mxu0 0.0
        %840 = vmatpush.msra.mxu0 0.0
        %841 = vmatpush.msra.mxu0 0.0
        %842 = vmatpush.msra.mxu0 0.0
        %843 = vmatpush.msra.mxu0 0.0
        %844 = vmatpush.msra.mxu0 0.0
        %845 = vmatpush.msra.mxu0 0.0
        %846 = vmatpush.msra.mxu0 0.0
        %847 = vmatpush.msra.mxu0 0.0
        %848 = vmatpush.msra.mxu0 %v690
        %849 = vmatpush.msra.mxu0 %v689
        %850 = vmatmul.f32.gmra.mxu0 %v832
        %v851 = vpop.f32.mrf.mxu0
        %v852 = vadd.f32 %v716, %v851
        %853 = vdwg.mxu0
        %v855 = vsel %vm694, %v671, 0
        %857 = vmatpush.msra.mxu0 0.0
        %858 = vmatpush.msra.mxu0 0.0
        %859 = vmatpush.msra.mxu0 0.0
        %860 = vmatpush.msra.mxu0 0.0
        %861 = vmatpush.msra.mxu0 0.0
        %862 = vmatpush.msra.mxu0 0.0
        %863 = vmatpush.msra.mxu0 0.0
        %864 = vmatpush.msra.mxu0 0.0
        %865 = vmatpush.msra.mxu0 0.0
        %866 = vmatpush.msra.mxu0 0.0
        %867 = vmatpush.msra.mxu0 0.0
        %868 = vmatpush.msra.mxu0 0.0
        %869 = vmatpush.msra.mxu0 0.0
        %870 = vmatpush.msra.mxu0 0.0
        %871 = vmatpush.msra.mxu0 %v720
        %872 = vmatpush.msra.mxu0 %v719
        %873 = vmatmul.f32.gmra.mxu0 %v855
        %v874 = vpop.f32.mrf.mxu0
        %v875 = vadd.f32 %v745, %v874
        %876 = vdwg.mxu0
        %v877 = vadd.f32 %v852, %v875
        %v879 = vsel %vm694, %v676, 0
        %881 = vmatpush.msra.mxu0 0.0
        %882 = vmatpush.msra.mxu0 0.0
        %883 = vmatpush.msra.mxu0 0.0
        %884 = vmatpush.msra.mxu0 0.0
        %885 = vmatpush.msra.mxu0 0.0
        %886 = vmatpush.msra.mxu0 0.0
        %887 = vmatpush.msra.mxu0 0.0
        %888 = vmatpush.msra.mxu0 0.0
        %889 = vmatpush.msra.mxu0 0.0
        %890 = vmatpush.msra.mxu0 0.0
        %891 = vmatpush.msra.mxu0 0.0
        %892 = vmatpush.msra.mxu0 0.0
        %893 = vmatpush.msra.mxu0 0.0
        %894 = vmatpush.msra.mxu0 0.0
        %895 = vmatpush.msra.mxu0 %v749
        %896 = vmatpush.msra.mxu0 %v748
        %897 = vmatmul.f32.gmra.mxu0 %v879
        %v898 = vpop.f32.mrf.mxu0
        %v899 = vadd.f32 %v774, %v898
        %900 = vdwg.mxu0
        %v902 = vsel %vm694, %v681, 0
        %904 = vmatpush.msra.mxu0 0.0
        %905 = vmatpush.msra.mxu0 0.0
        %906 = vmatpush.msra.mxu0 0.0
        %907 = vmatpush.msra.mxu0 0.0
        %908 = vmatpush.msra.mxu0 0.0
        %909 = vmatpush.msra.mxu0 0.0
        %910 = vmatpush.msra.mxu0 0.0
        %911 = vmatpush.msra.mxu0 0.0
        %912 = vmatpush.msra.mxu0 0.0
        %913 = vmatpush.msra.mxu0 0.0
        %914 = vmatpush.msra.mxu0 0.0
        %915 = vmatpush.msra.mxu0 0.0
        %916 = vmatpush.msra.mxu0 0.0
        %917 = vmatpush.msra.mxu0 0.0
        %918 = vmatpush.msra.mxu0 %v778
        %919 = vmatpush.msra.mxu0 %v777
        %920 = vmatmul.f32.gmra.mxu0 %v902
        %v921 = vpop.f32.mrf.mxu0
        %v922 = vadd.f32 %v803, %v921
        %923 = vdwg.mxu0
        %v924 = vadd.f32 %v899, %v922
        %v925 = vadd.f32 %v877, %v924
        %v926 = vadd.f32 %v925, %v829
        %v927 = vld [vmem:[%s5] sm:$0xff]
        %929 = vset.pattern.permute.xlu0 0
        %930 = vperm.xlu0 %929, %v927
        %v931 = vpop.permute.xlu0 %930
        %v933 = vadd.f32 %v926, %v931
        %v934 = vmax.f32 %v933, 0.0
        %v935 = vld [vmem:[%s7] sm:$0xf]
        %v936 = vpack.c.bf16 %v934, %v934
        %v937 = vld [vmem:[%s8] sm:$0xff]
        %939 = vset.pattern.permute.xlu0 0
        %940 = vperm.xlu0 %939, %v937
        %v941 = vpop.permute.xlu0 %940
        %v944 = vsel %vm372, %v935, 0
        %v947 = vsel %vm376, %v936, 0
        %949 = vmatpush.bf16.msra.mxu0 0
        %950 = vmatpush.bf16.msra.mxu0 0
        %951 = vmatpush.bf16.msra.mxu0 0
        %952 = vmatpush.bf16.msra.mxu0 0
        %953 = vmatpush.bf16.msra.mxu0 0
        %954 = vmatpush.bf16.msra.mxu0 0
        %955 = vmatpush.bf16.msra.mxu0 0
        %956 = vmatpush.bf16.msra.mxu0 %v947
        %957 = vmatmul.bf16.gmra.mxu0 %v944
        %v958 = vpop.f32.mrf.mxu0
        %v959 = vadd.f32 %v941, %v958
        %v960 = vpop.f32.mrf.mxu0
        %961 = vdwg.mxu0
        %v962 = vxor.u32 %v959, 2147483648
        %v963 = vmul.f32 %v962, 1.442695
        %v964 = vpow.pop %v963
        %v965 = vadd.f32 %v964, 1.0
        %v966 = vrcp.pop %v965
        %v967 = vmul.f32 %v965, %v966
        %v968 = vsub.f32 1.0, %v967
        %v969 = vmul.f32 %v966, %v968
        %v970 = vadd.f32 %v966, %v969
        %vm971 = vweird.f32 %v965
        %vm972 = vweird.f32 %v966
        %vm973 = vmor %vm971, %vm972
        %v974 = vsel %vm973, %v966, %v970
        %v975 = vand.u32 2147483647, %v965
        %vm976 = vcmp.eq.f32.partialorder %v975, 8.507059e+37
        %v977 = vand.u32 %v965, 2147483648
        %v978 = vor.u32 1.1754944e-38, %v977
        %v979 = vsel %vm976, %v978, %v974
        %v980 = vmul.f32 1.0, %v979
        %v981 = vpack.c.bf16 %v980, %v980
        %v982 = vld [vmem:[%s9] sm:$0xff]
        %v983 = vld [vmem:[%s9 + $0x8] sm:$0xff]
        %v986 = vunpack.c.l.b16 %v982
        %v987 = vunpack.c.h.b16 %v982
        %v988 = vunpack.c.l.b16 %v983
        %v989 = vunpack.c.h.b16 %v983
        %v990 = vpack.c.b16 %v988, %v986
        %v991 = vpack.c.b16 %v989, %v987
        %v995 = vsel %vm694, %v981, 0
        %997 = vmatpush.bf16.msra.mxu0 0
        %998 = vmatpush.bf16.msra.mxu0 0
        %999 = vmatpush.bf16.msra.mxu0 0
        %1000 = vmatpush.bf16.msra.mxu0 0
        %1001 = vmatpush.bf16.msra.mxu0 0
        %1002 = vmatpush.bf16.msra.mxu0 0
        %1003 = vmatpush.bf16.msra.mxu0 0
        %1004 = vmatpush.bf16.msra.mxu0 %v990
        %1005 = vmatmul.bf16.gmra.mxu0 %v995
        %v1006 = vpop.f32.mrf.mxu0
        %v1007 = vadd.f32 0.0, %v1006
        %v1008 = vpop.f32.mrf.mxu0
        %1009 = vdwg.mxu0
        %1010 = vmatpush.bf16.msra.mxu0 0
        %1011 = vmatpush.bf16.msra.mxu0 0
        %1012 = vmatpush.bf16.msra.mxu0 0
        %1013 = vmatpush.bf16.msra.mxu0 0
        %1014 = vmatpush.bf16.msra.mxu0 0
        %1015 = vmatpush.bf16.msra.mxu0 0
        %1016 = vmatpush.bf16.msra.mxu0 0
        %1017 = vmatpush.bf16.msra.mxu0 %v991
        %1018 = vmatmul.bf16.gmra.mxu0 %v995
        %v1019 = vpop.f32.mrf.mxu0
        %v1020 = vadd.f32 0.0, %v1019
        %v1021 = vpop.f32.mrf.mxu0
        %1022 = vdwg.mxu0
        %v1023 = vmul.f32 %v447, %v1007
        %v1024 = vmul.f32 %v448, %v1020
        %1025 = vst [vmem:[%s352] sm:$0xff] %v1023
        %1026 = vst [vmem:[%s352 + $0x8] sm:$0xff] %v1024
        %s1027 = sand.u32 %s247, 1
        %s1028 = scalar_lea.sflag [#allocation3], %s1027
        %s1029 = sand.u32 %s247, 1
        %s1030 = smul.addr %s1029, 16
        %s1031 = scalar_lea.vmem [#allocation2], %s1030
        // Predicated region
        $region61: #{tpu_custom_call.1} parent=59 // pred_check
          %p1032 = pneg %p257
        $region62: #{tpu_custom_call.1} parent=59 // pred_check_branch
          %1034 = sbr.rel (%p1032) target = $region64
        $region63: #{tpu_custom_call.1} parent=59 // pred_region
          %1036 = vsyncadd %s1028, 0
          %s1037 = smul.addr %s24, 2
          %s1038 = smul.addr %s1037, 8
          %s1039 = scalar_lea.hbm %s10, %s1038
          %s1041 = sshll.u32 %s1031, 4
          %s1042 = int_to_ptr.vmem [resolvable:$true] %s1041
          %s1043 = sshll.u32 %s1039, 4
          %s1044 = int_to_ptr.hbm [resolvable:$true] %s1043
          %1046 = dma.vmem_to_hbm [thread:$0]  %s1042, 256, %s1044, %s1028
        $region64: #{tpu_custom_call.1} parent=59 // pred_fallthru
          _
      $region60: #{tpu_custom_call.1} parent=5 // pred_fallthru
        _
      %p1047 = scmp.le.s32.totalorder 2, %s19
      // Predicated region
      $region65: #{tpu_custom_call.1} parent=5 // pred_check
        %p1048 = pneg %p1047
      $region66: #{tpu_custom_call.1} parent=5 // pred_check_branch
        %1050 = sbr.rel (%p1048) target = $region68
      $region67: #{tpu_custom_call.1} parent=5 // pred_region
        %s1051 = ssub.s32 %s19, 2
        // Predicated region
        $region69: #{tpu_custom_call.1} parent=67 // pred_check
          %p1052 = pneg %p263
        $region70: #{tpu_custom_call.1} parent=67 // pred_check_branch
          %1054 = sbr.rel (%p1052) target = $region72
        $region71: #{tpu_custom_call.1} parent=67 // pred_region
          %s1055 = sand.u32 %s248, 1
          %s1056 = scalar_lea.sflag [#allocation3], %s1055
          %s1057 = sand.u32 %s248, 1
          %s1058 = smul.addr %s1057, 16
          %s1059 = scalar_lea.vmem [#allocation2], %s1058
          %1061 = dma.done %s1056, 256
        $region72: #{tpu_custom_call.1} parent=67 // pred_fallthru
          _
      $region68: #{tpu_custom_call.1} parent=5 // pred_fallthru
        _
    $region6: #{tpu_custom_call.1} parent=1 // loop_footer
      %s23 = sadd.s32 1, %s19
    $region7: #{tpu_custom_call.1} parent=1 // loop_footer_branch
      %18 = sbr.rel target = $region3
    $region8: #{tpu_custom_call.1} parent=1 // loop_exit
      _
    %1062 = vsyncpa [#allocation3], 1
    %s1063 = scalar_lea.sflag [#allocation3], 1
    %1064 = vsyncpa %s1063, 1

</llo_original>
